<compile_context>
chip_gen: v7x
topology: tpu7x:2x2x1
jax: 0.10.0
libtpu: 0.0.40
codegen_flags: <defaults>
</compile_context>

<pallas_src>
import functools

import jax
import jax.numpy as jnp
from jax.experimental import pallas as pl
from jax.experimental.pallas import tpu as pltpu

M_MARGIN = 0.2
S_SCALE = 10.0

_TB_MAX = 256     # batch tile (sublane axis), multiple of 8
_TC_MAX = 4096    # class tile (lane axis), multiple of 128 -> 4 MiB f32 per buffer
_NEG = -1e30      # neutral fill for invalid (ragged) class columns


def _round_up(x, n):
    return ((x + n - 1) // n) * n


def _row_lse_kernel(x_ref, o_ref, m_sc, l_sc, *, c_total, ragged):
    """One (batch-tile, class-tile) step of a streaming per-row logsumexp."""
    j = pl.program_id(1)

    @pl.when(j == 0)
    def _init():
        m_sc[...] = jnp.full_like(m_sc, -jnp.inf)
        l_sc[...] = jnp.zeros_like(l_sc)

    x = x_ref[...].astype(jnp.float32)               # (TB, TC)

    if ragged:
        # Only emitted when C % TC != 0.  Local lane iota vs scalar remainder; for
        # non-last class tiles the remainder >= TC so the mask is all-true.
        tb, tc = x.shape
        rem = c_total - j * tc
        lane = jax.lax.broadcasted_iota(jnp.int32, (tb, tc), 1)
        x = jnp.where(lane < rem, x, jnp.float32(_NEG))

    # Online (streaming) logsumexp over the class axis.
    m_prev = m_sc[...]
    m_new = jnp.maximum(m_prev, jnp.max(x, axis=1, keepdims=True))
    alpha = jnp.exp(m_prev - m_new)                  # exp(-inf - finite) = 0 at j==0
    l_sc[...] = alpha * l_sc[...] + jnp.sum(jnp.exp(x - m_new), axis=1, keepdims=True)
    m_sc[...] = m_new

    @pl.when(j == pl.num_programs(1) - 1)
    def _finalize():
        lse = m_sc[...] + jnp.log(l_sc[...])         # (TB, 1)
        # Lane-dense store: per-row lse broadcast across 128 lanes.
        o_ref[...] = jnp.broadcast_to(lse, o_ref.shape)


def _row_logsumexp(x, tb_max=_TB_MAX, tc_max=_TC_MAX):
    """Per-row logsumexp of x: (B, C) -> (B,) float32, computed with a Pallas kernel."""
    B, C = x.shape

    # Batch tile: full block for tiny B; otherwise guarantee >= 2 blocks along the
    # "parallel" axis so both v7x TensorCores are used (no effect on v5e/v6e).
    if B <= 16:
        tb = B
    else:
        tb = min(tb_max, _round_up(pl.cdiv(B, 2), 8))

    # Class tile: full block for small C (block == full dim is always legal), else a
    # 128-aligned 4096-wide tile.
    tc = C if C <= tc_max else tc_max
    ragged = (C % tc) != 0

    grid = (pl.cdiv(B, tb), pl.cdiv(C, tc))

    cost = pl.CostEstimate(
        flops=3 * B * C,
        transcendentals=B * C,
        bytes_accessed=B * C * x.dtype.itemsize + B * 128 * 4,
    )

    lse_wide = pl.pallas_call(
        functools.partial(_row_lse_kernel, c_total=C, ragged=ragged),
        out_shape=jax.ShapeDtypeStruct((B, 128), jnp.float32),
        grid_spec=pltpu.PrefetchScalarGridSpec(
            num_scalar_prefetch=0,
            grid=grid,
            in_specs=[
                pl.BlockSpec((tb, tc), lambda i, j: (i, j)),   # logits tile
            ],
            out_specs=pl.BlockSpec((tb, 128), lambda i, j: (i, 0)),  # resident across j
            scratch_shapes=[
                pltpu.VMEM((tb, 1), jnp.float32),  # running max
                pltpu.VMEM((tb, 1), jnp.float32),  # running exp-sum
            ],
        ),
        compiler_params=pltpu.CompilerParams(
            dimension_semantics=("parallel", "arbitrary"),
            vmem_limit_bytes=32 * 1024 * 1024,
        ),
        cost_estimate=cost,
    )(x)

    return lse_wide[:, 0]


def margin_loss(x, target, m=M_MARGIN, s=S_SCALE):
    """x: (B, C) float logits, target: (B,) int class indices. Returns scalar mean loss."""
    B, C = x.shape

    # Heavy part (B x C scan) in the Pallas kernel: plain per-row logsumexp of raw logits.
    lse = _row_logsumexp(x)                                       # (B,) f32

    # Tiny O(B) post-processing in the wrapper: gather target logits and fold in the margin
    # as an exact per-row correction of the logsumexp.
    #   lse_adj = log( exp(lse) - exp(x_t) + exp(x_t - m*s) )
    #           = lse + log1p( exp(x_t - m*s - lse) - exp(x_t - lse) )
    ms = jnp.float32(m * s)
    xt = x[jnp.arange(B), target].astype(jnp.float32)             # (B,) target logits
    lse_adj = lse + jnp.log1p(jnp.exp(xt - ms - lse) - jnp.exp(xt - lse))
    per_sample = lse_adj - (xt - ms)                              # cross-entropy per sample
    return jnp.mean(per_sample)


def _reference(x, target, m=M_MARGIN, s=S_SCALE):
    # Pure-JAX reference mirroring the PyTorch module.
    B, C = x.shape
    onehot = jax.nn.one_hot(target, C, dtype=x.dtype)
    out = jnp.where(onehot > 0, x - m * s, x)
    logp = jax.nn.log_softmax(out, axis=1)
    return -jnp.mean(jnp.sum(onehot * logp, axis=1))


if __name__ == "__main__":
    key = jax.random.PRNGKey(0)

    # Small aligned case.
    kx, kt = jax.random.split(key)
    B, C = 8, 16
    x = jax.random.normal(kx, (B, C), dtype=jnp.float32)
    target = jax.random.randint(kt, (B,), 0, C, dtype=jnp.int32)
    loss = margin_loss(x, target)
    jax.block_until_ready(loss)
    ref = _reference(x, target)
    assert jnp.allclose(loss, ref, atol=1e-5, rtol=1e-5), (loss, ref)

    # Ragged-batch case (B > 16 -> two batch blocks, last one ragged).
    kx2, kt2 = jax.random.split(kt)
    B2, C2 = 24, 16
    x2 = jax.random.normal(kx2, (B2, C2), dtype=jnp.float32)
    target2 = jax.random.randint(kt2, (B2,), 0, C2, dtype=jnp.int32)
    loss2 = margin_loss(x2, target2)
    jax.block_until_ready(loss2)
    ref2 = _reference(x2, target2)
    assert jnp.allclose(loss2, ref2, atol=1e-5, rtol=1e-5), (loss2, ref2)

    print("KERNEL_OK")
</pallas_src>

<mosaic_0001>
module attributes {stable_mosaic.version = 11 : i64} {
  func.func @_row_lse_kernel(%arg0: i32, %arg1: i32, %arg2: memref<8x16xf32, #tpu.memory_space<vmem>>, %arg3: memref<8x128xf32, #tpu.memory_space<vmem>>, %arg4: memref<8x1xf32, #tpu.memory_space<vmem>>, %arg5: memref<8x1xf32, #tpu.memory_space<vmem>>) attributes {dimension_semantics = [#tpu.dimension_semantics<parallel>, #tpu.dimension_semantics<arbitrary>], iteration_bounds = array<i64: 1, 1>, scalar_prefetch = 0 : i64, scratch_operands = 2 : i64, tpu.core_type = #tpu.core_type<tc>, window_params = [{transform_indices = @transform_0, window_bounds = array<i64: 8, 16>}, {transform_indices = @transform_1, window_bounds = array<i64: 8, 128>}]} {
    %c0_i32 = arith.constant 0 : i32
    %0 = arith.cmpi eq, %arg1, %c0_i32 : i32
    %1 = arith.extui %0 : i1 to i32
    %c0_i32_0 = arith.constant 0 : i32
    %2 = arith.cmpi ne, %1, %c0_i32_0 : i32
    scf.if %2 {
      %cst_13 = arith.constant 0xFF800000 : f32
      %23 = vector.broadcast %cst_13 : f32 to vector<8x1xf32>
      %c0_14 = arith.constant 0 : index
      %c0_15 = arith.constant 0 : index
      %24 = vector.load %arg4[%c0_14, %c0_15] : memref<8x1xf32, #tpu.memory_space<vmem>>, vector<8x1xf32>
      tpu.vector_store %arg4[%c0_14, %c0_15], %23 {strides = array<i32>} : memref<8x1xf32, #tpu.memory_space<vmem>>, vector<8x1xf32>,
      %cst_16 = arith.constant 0.000000e+00 : f32
      %25 = vector.broadcast %cst_16 : f32 to vector<8x1xf32>
      %c0_17 = arith.constant 0 : index
      %c0_18 = arith.constant 0 : index
      %26 = vector.load %arg5[%c0_17, %c0_18] : memref<8x1xf32, #tpu.memory_space<vmem>>, vector<8x1xf32>
      tpu.vector_store %arg5[%c0_17, %c0_18], %25 {strides = array<i32>} : memref<8x1xf32, #tpu.memory_space<vmem>>, vector<8x1xf32>,
    } else {
    }
    %c0 = arith.constant 0 : index
    %c0_1 = arith.constant 0 : index
    %3 = vector.load %arg2[%c0, %c0_1] : memref<8x16xf32, #tpu.memory_space<vmem>>, vector<8x16xf32>
    %c0_2 = arith.constant 0 : index
    %c0_3 = arith.constant 0 : index
    %4 = vector.load %arg4[%c0_2, %c0_3] : memref<8x1xf32, #tpu.memory_space<vmem>>, vector<8x1xf32>
    %cst = arith.constant dense<0xFF800000> : vector<8xf32>
    %5 = vector.multi_reduction <maximumf>, %3, %cst [1] : vector<8x16xf32> to vector<8xf32>
    %6 = vector.shape_cast %5 : vector<8xf32> to vector<8x1xf32>
    %7 = arith.maximumf %4, %6 : vector<8x1xf32>
    %8 = arith.subf %4, %7 : vector<8x1xf32>
    %9 = math.exp %8 : vector<8x1xf32>
    %c0_4 = arith.constant 0 : index
    %c0_5 = arith.constant 0 : index
    %10 = vector.load %arg5[%c0_4, %c0_5] : memref<8x1xf32, #tpu.memory_space<vmem>>, vector<8x1xf32>
    %11 = arith.mulf %9, %10 : vector<8x1xf32>
    %12 = vector.broadcast %7 : vector<8x1xf32> to vector<8x16xf32>
    %13 = arith.subf %3, %12 : vector<8x16xf32>
    %14 = math.exp %13 : vector<8x16xf32>
    %cst_6 = arith.constant dense<0.000000e+00> : vector<8xf32>
    %15 = vector.multi_reduction <add>, %14, %cst_6 [1] : vector<8x16xf32> to vector<8xf32>
    %16 = vector.shape_cast %15 : vector<8xf32> to vector<8x1xf32>
    %17 = arith.addf %11, %16 : vector<8x1xf32>
    %c0_7 = arith.constant 0 : index
    %c0_8 = arith.constant 0 : index
    %18 = vector.load %arg5[%c0_7, %c0_8] : memref<8x1xf32, #tpu.memory_space<vmem>>, vector<8x1xf32>
    tpu.vector_store %arg5[%c0_7, %c0_8], %17 {strides = array<i32>} : memref<8x1xf32, #tpu.memory_space<vmem>>, vector<8x1xf32>,
    %c0_9 = arith.constant 0 : index
    %c0_10 = arith.constant 0 : index
    %19 = vector.load %arg4[%c0_9, %c0_10] : memref<8x1xf32, #tpu.memory_space<vmem>>, vector<8x1xf32>
    tpu.vector_store %arg4[%c0_9, %c0_10], %7 {strides = array<i32>} : memref<8x1xf32, #tpu.memory_space<vmem>>, vector<8x1xf32>,
    %c0_i32_11 = arith.constant 0 : i32
    %20 = arith.cmpi eq, %arg1, %c0_i32_11 : i32
    %21 = arith.extui %20 : i1 to i32
    %c0_i32_12 = arith.constant 0 : i32
    %22 = arith.cmpi ne, %21, %c0_i32_12 : i32
    scf.if %22 {
      %c0_13 = arith.constant 0 : index
      %c0_14 = arith.constant 0 : index
      %23 = vector.load %arg4[%c0_13, %c0_14] : memref<8x1xf32, #tpu.memory_space<vmem>>, vector<8x1xf32>
      %c0_15 = arith.constant 0 : index
      %c0_16 = arith.constant 0 : index
      %24 = vector.load %arg5[%c0_15, %c0_16] : memref<8x1xf32, #tpu.memory_space<vmem>>, vector<8x1xf32>
      %25 = math.log %24 : vector<8x1xf32>
      %26 = arith.addf %23, %25 : vector<8x1xf32>
      %27 = vector.shape_cast %26 : vector<8x1xf32> to vector<8x1xf32>
      %28 = vector.broadcast %27 : vector<8x1xf32> to vector<8x128xf32>
      %c0_17 = arith.constant 0 : index
      %c0_18 = arith.constant 0 : index
      %29 = vector.load %arg3[%c0_17, %c0_18] : memref<8x128xf32, #tpu.memory_space<vmem>>, vector<8x128xf32>
      tpu.vector_store %arg3[%c0_17, %c0_18], %28 {strides = array<i32>} : memref<8x128xf32, #tpu.memory_space<vmem>>, vector<8x128xf32>,
    } else {
    }
    return
  }
  func.func @transform_0(%arg0: i32, %arg1: i32) -> (i32, i32) {
    %c0_i32 = arith.constant 0 : i32
    return %arg0, %arg1 : i32, i32
  }
  func.func @transform_1(%arg0: i32, %arg1: i32) -> (i32, i32) {
    %c0_i32 = arith.constant 0 : i32
    %c0_i32_0 = arith.constant 0 : i32
    return %arg0, %c0_i32 : i32, i32
  }
}

</mosaic_0001>

<llo_original>
// kernel: tpu_custom_call.1
$region0: #{tpu_custom_call.1}
  #allocation0 [shape = 'u32[]', space=smem, size = 0x4, offset = 0x4, fixed_abs, tag = 'smem constant byte address 0x4 - core index']
  #allocation1 [shape = 'u32[144,128]{1,0:T(1,128)}', space=vmem, size = 0x12000, scoped, tag = 'internal scratch']
  #allocation2 [shape = 'f32[8,1]{1,0:T(8,128)}', space=vmem, size = 0x1000, scoped, tag = 'scratch operand']
  #allocation3 [shape = 'f32[8,1]{1,0:T(8,128)}', space=vmem, size = 0x1000, scoped, tag = 'scratch operand']
  %s0 = inlined_call_operand.hbm [shape: f32[8,16], index: 0, kind: input, shape index: {}]
  %s1 = inlined_call_operand.hbm [shape: f32[8,128], index: 1, kind: output, shape index: {}]
  %s2 = sld [smem:[#allocation0]]
  $region26: #{tpu_custom_call.1} parent=0
    _
  %s4 = ssub.s32 1, %s2
  %s5 = scalar_select 0, %s4, %s2
  $region1: #{tpu_custom_call.1} parent=0
    #allocation4 [shape = 'u8[4096]{0}', space=vmem, size = 0x1000, scoped, tag = 'input window, operand 0, single buffered']
    #allocation5 [shape = 's32[1]{0}', space=sflag, size = 0x4, scoped, tag = 'scoped memory for tpu_custom_call.1']
    #allocation6 [shape = 's32[1]{0}', space=sflag, size = 0x4, scoped, tag = 'scoped memory for tpu_custom_call.1']
    #allocation7 [shape = 'u8[4096]{0}', space=vmem, size = 0x1000, scoped, tag = 'output window, operand 0, single buffered']
    %6 = vsyncpa [#allocation5], 0
    %7 = vsyncpa [#allocation6], 0
    // Predicated region
    $region2: #{tpu_custom_call.1} parent=1 // pred_check
      _
    $region3: #{tpu_custom_call.1} parent=1 // pred_check_branch
      %9 = sbr.rel (0) target = $region5
    $region4: #{tpu_custom_call.1} parent=1 // pred_region
      %s11 = ssub.s32 128, 128
      %12 = vsyncadd [#allocation5], %s11
      %s14 = sshll.u32 [#allocation4], 4
      %s15 = int_to_ptr.vmem [resolvable:$true] %s14
      %17 = dma.hbm_to_vmem [thread:$0]  %s0, 128, %s15, [#allocation5]
    $region5: #{tpu_custom_call.1} parent=1 // pred_fallthru
      _
    // Predicated region
    $region6: #{tpu_custom_call.1} parent=1 // pred_check
      _
    $region7: #{tpu_custom_call.1} parent=1 // pred_check_branch
      %19 = sbr.rel (0) target = $region9
    $region8: #{tpu_custom_call.1} parent=1 // pred_region
      %20 = dma.done [#allocation5], 128
    $region9: #{tpu_custom_call.1} parent=1 // pred_fallthru
      _
    %p21 = scmp.eq.s32.totalorder 0, 0
    // Predicated region
    $region10: #{tpu_custom_call.1} parent=1 // pred_check
      %p22 = pneg %p21
    $region11: #{tpu_custom_call.1} parent=1 // pred_check_branch
      %24 = sbr.rel (%p22) target = $region13
    $region12: #{tpu_custom_call.1} parent=1 // pred_region
      %vm25 = vcmask 7168
      %26 = vst.msk [vmem:[#allocation2] sm:$0xff] %vm25, -inf
      %27 = vst.msk [vmem:[#allocation3] sm:$0xff] %vm25, 0.0
    $region13: #{tpu_custom_call.1} parent=1 // pred_fallthru
      _
    %v28 = vld [vmem:[#allocation4] sm:$0xff]
    %v29 = vld [vmem:[#allocation2] sm:$0xff]
    %vm30 = vcmask 130048
    %v31 = vsel %vm30, %v28, -inf
    %32 = vmax.xlane.f32.xlu0 %v31
    %v33 = vpop.xlane.xlu0 %32
    %v34 = vmax.f32 %v29, %v33
    %v35 = vsub.f32 %v29, %v34
    %v36 = vmul.f32 %v35, 1.442695
    %v37 = vpow.pop %v36
    %v38 = vld [vmem:[#allocation3] sm:$0xff]
    %v39 = vmul.f32 %v37, %v38
    %41 = vset.pattern.permute.xlu0 0
    %42 = vperm.xlu0 %41, %v34
    %v43 = vpop.permute.xlu0 %42
    %v45 = vsub.f32 %v28, %v43
    %v46 = vmul.f32 %v45, 1.442695
    %v47 = vpow.pop %v46
    %v48 = vsel %vm30, %v47, 0.0
    %49 = vadd.xlane.f32.xlu0 %v48
    %v50 = vpop.xlane.xlu0 %49
    %v51 = vadd.f32 %v39, %v50
    %vm52 = vcmask 7168
    %53 = vst.msk [vmem:[#allocation3] sm:$0xff] %vm52, %v51
    %54 = vst.msk [vmem:[#allocation2] sm:$0xff] %vm52, %v34
    // Predicated region
    $region14: #{tpu_custom_call.1} parent=1 // pred_check
      %p55 = pneg %p21
    $region15: #{tpu_custom_call.1} parent=1 // pred_check_branch
      %57 = sbr.rel (%p55) target = $region17
    $region16: #{tpu_custom_call.1} parent=1 // pred_region
      %v58 = vld [vmem:[#allocation2] sm:$0xff]
      %v59 = vld [vmem:[#allocation3] sm:$0xff]
      %v60 = vlog2.pop %v59
      %v61 = vmul.f32 %v60, 0.6931472
      %v62 = vadd.f32 %v58, %v61
      %64 = vset.pattern.permute.xlu0 0
      %65 = vperm.xlu0 %64, %v62
      %v66 = vpop.permute.xlu0 %65
      %68 = vst [vmem:[#allocation7] sm:$0xff] %v66
    $region17: #{tpu_custom_call.1} parent=1 // pred_fallthru
      _
    // Predicated region
    $region18: #{tpu_custom_call.1} parent=1 // pred_check
      _
    $region19: #{tpu_custom_call.1} parent=1 // pred_check_branch
      %70 = sbr.rel (0) target = $region21
    $region20: #{tpu_custom_call.1} parent=1 // pred_region
      %s72 = ssub.s32 128, 128
      %73 = vsyncadd [#allocation6], %s72
      %s75 = sshll.u32 [#allocation7], 4
      %s76 = int_to_ptr.vmem [resolvable:$true] %s75
      %78 = dma.vmem_to_hbm [thread:$0]  %s76, 128, %s1, [#allocation6]
    $region21: #{tpu_custom_call.1} parent=1 // pred_fallthru
      _
    // Predicated region
    $region22: #{tpu_custom_call.1} parent=1 // pred_check
      _
    $region23: #{tpu_custom_call.1} parent=1 // pred_check_branch
      %80 = sbr.rel (0) target = $region25
    $region24: #{tpu_custom_call.1} parent=1 // pred_region
      %81 = dma.done [#allocation6], 128
    $region25: #{tpu_custom_call.1} parent=1 // pred_fallthru
      _
    %82 = vsyncpa [#allocation5], 1
    %83 = vsyncpa [#allocation6], 1

</llo_original>
